<compile_context>
chip_gen: v6e
topology: v6e:2x2x1
jax: 0.10.0
libtpu: 0.0.40
codegen_flags: <defaults>
</compile_context>

<pallas_src>
import math

import jax
import jax.numpy as jnp
from jax import lax
from jax.experimental import pallas as pl
from jax.experimental.pallas import tpu as pltpu

LANE = 128      # TPU lane width; class dim padded to a multiple of this.
TC_MAX = 512    # max class tile (multiple of 128).
TB_MAX = 256    # max batch tile (matches v6e/v7x 256-wide MXU).


def cosine_head_kernel(feat_ref, wn_ref, out_ref):
    """One (batch-tile, class-tile) block of the cosine classifier head.

    The raw feature tile is pushed to the MXU against the pre-normalized bf16
    weight tile; the feature-norm rsqrt is computed in f32 concurrently
    (VPU/XLU/EUP slots hide under the matmul) and applied to the f32
    accumulator before the lane-dense store."""
    feat_raw = feat_ref[...]

    # MXU: transpose-free contraction over axis 1 of both operands
    # (feat @ w_n.T), bf16 inputs with f32 accumulation.
    acc = lax.dot_general(
        feat_raw.astype(jnp.bfloat16), wn_ref[...],
        dimension_numbers=(((1,), (1,)), ((), ())),
        preferred_element_type=jnp.float32,
    )

    # Row-wise 1/||feat|| in f32 (single EUP rsqrt; no sqrt/divide).
    # NOTE: no epsilon, matching the PyTorch code exactly (an all-zero feature
    # row yields NaN there too).
    f32 = feat_raw.astype(jnp.float32)
    inv_norm = lax.rsqrt(jnp.sum(f32 * f32, axis=1, keepdims=True))

    out_ref[...] = (acc * inv_norm).astype(out_ref.dtype)


def prepare_classifier_weight(weight: jax.Array) -> jax.Array:
    """Done ONCE at init/load time (weights are static at inference):
    row-wise L2 normalize, zero-pad the class dim to a multiple of 128
    (lane-dense), cast to bf16.  Normalize BEFORE padding so the zero pad rows
    never hit a 0/0."""
    w = weight.astype(jnp.float32)
    w_n = w * lax.rsqrt(jnp.sum(w * w, axis=1, keepdims=True))
    num_cls, _ = w.shape
    c_pad = pl.cdiv(num_cls, LANE) * LANE
    if c_pad != num_cls:
        w_n = jnp.pad(w_n, ((0, c_pad - num_cls), (0, 0)))
    return w_n.astype(jnp.bfloat16)


def cosine_classifier(feat: jax.Array, weight_prepped: jax.Array,
                      num_cls: int, *, out_dtype=jnp.float32) -> jax.Array:
    """Pallas call: 2-D grid over (batch tiles, class tiles), both parallel.
    Slices the padded logits back down to [B, num_cls] outside the kernel."""
    B, D = feat.shape
    c_pad, D2 = weight_prepped.shape
    assert D == D2 and c_pad % LANE == 0

    # Batch tiling.  A full-extent batch block is exempt from the (8,128)
    # rule, so any B <= TB_MAX (including 1..7) runs as a single block.
    # Larger batches are zero-padded to a multiple of 8 and tiled with the
    # largest dividing tile up to TB_MAX.
    if B <= TB_MAX:
        b_pad, tb = B, B
    else:
        b_pad = pl.cdiv(B, 8) * 8
        tb = next(t for t in (256, 128, 64, 32, 16, 8) if b_pad % t == 0)
    feat_in = feat if b_pad == B else jnp.pad(feat, ((0, b_pad - B), (0, 0)))

    # Class tiling: largest of (512, 256, 128) dividing the lane-padded class
    # count.  Bounds weight VMEM to tc*D*2B (double-buffered) regardless of
    # num_cls and gives v7x a second parallel axis to split.
    tc = next(t for t in (TC_MAX, 256, LANE) if c_pad % t == 0)

    grid = (b_pad // tb, c_pad // tc)

    logits_padded = pl.pallas_call(
        cosine_head_kernel,
        out_shape=jax.ShapeDtypeStruct((b_pad, c_pad), out_dtype),
        grid=grid,
        in_specs=[
            pl.BlockSpec((tb, D), lambda i, j: (i, 0)),
            pl.BlockSpec((tc, D), lambda i, j: (j, 0)),
        ],
        out_specs=pl.BlockSpec((tb, tc), lambda i, j: (i, j)),
        compiler_params=pltpu.CompilerParams(
            dimension_semantics=("parallel", "parallel"),
        ),
    )(feat_in, weight_prepped)
    return logits_padded[:B, :num_cls]


def init_classifier_weight(key, num_cls: int, last_channels: int) -> jax.Array:
    """Deterministic equivalent of nn.init.kaiming_uniform_(w, a=sqrt(5)):
    bound = 1/sqrt(fan_in), fan_in = last_channels."""
    bound = 1.0 / math.sqrt(last_channels)
    return jax.random.uniform(
        key, (num_cls, last_channels), dtype=jnp.float32,
        minval=-bound, maxval=bound,
    )


def reference_forward(feat, weight):
    """Plain-JAX f32 reference of the classifier head (matches PyTorch)."""
    feat_n = feat / jnp.sqrt(jnp.sum(feat ** 2, axis=1, keepdims=True))
    w_n = weight / jnp.sqrt(jnp.sum(weight ** 2, axis=1, keepdims=True))
    return feat_n @ w_n.T


if __name__ == "__main__":
    # Small, deterministic example shapes.
    batch = 8
    last_channels = 256   # "last_channels" of the MobileViT backbone
    num_cls = 16

    key = jax.random.PRNGKey(0)
    k_feat, k_w = jax.random.split(key)

    # Stand-in for the (undefined) MobileViT backbone output.
    feat_f32 = jax.random.normal(k_feat, (batch, last_channels), dtype=jnp.float32)
    weight = init_classifier_weight(k_w, num_cls, last_channels)

    # One-time weight prep (normalize + pad lane-dense + bf16).
    w_prepped = prepare_classifier_weight(weight)

    # Feature fed as bf16 (halved feat DMA; in production the backbone
    # epilogue would emit bf16 directly).  Norm stays f32 in-kernel.
    feat_bf16 = feat_f32.astype(jnp.bfloat16)

    logits = cosine_classifier(feat_bf16, w_prepped, num_cls)
    logits = jax.block_until_ready(logits)

    # Sanity check against the pure-f32 reference (tolerance covers the bf16
    # MXU inputs; accumulation and normalization stay f32).
    ref = reference_forward(feat_f32, weight)
    assert logits.shape == (batch, num_cls)
    assert logits.dtype == jnp.float32
    assert jnp.allclose(logits, ref, atol=2e-2, rtol=2e-2)

    print("KERNEL_OK")
</pallas_src>

<mosaic_0001>
module attributes {stable_mosaic.version = 11 : i64} {
  func.func @cosine_head_kernel(%arg0: i32, %arg1: i32, %arg2: memref<8x256xbf16, #tpu.memory_space<vmem>>, %arg3: memref<128x256xbf16, #tpu.memory_space<vmem>>, %arg4: memref<8x128xf32, #tpu.memory_space<vmem>>) attributes {dimension_semantics = [#tpu.dimension_semantics<parallel>, #tpu.dimension_semantics<parallel>], iteration_bounds = array<i64: 1, 1>, scalar_prefetch = 0 : i64, scratch_operands = 0 : i64, tpu.core_type = #tpu.core_type<tc>, window_params = [{transform_indices = @transform_0, window_bounds = array<i64: 8, 256>}, {transform_indices = @transform_1, window_bounds = array<i64: 128, 256>}, {transform_indices = @transform_2, window_bounds = array<i64: 8, 128>}]} {
    %c0 = arith.constant 0 : index
    %c0_0 = arith.constant 0 : index
    %0 = vector.load %arg2[%c0, %c0_0] : memref<8x256xbf16, #tpu.memory_space<vmem>>, vector<8x256xbf16>
    %c0_1 = arith.constant 0 : index
    %c0_2 = arith.constant 0 : index
    %1 = vector.load %arg3[%c0_1, %c0_2] : memref<128x256xbf16, #tpu.memory_space<vmem>>, vector<128x256xbf16>
    %cst = arith.constant dense<0.000000e+00> : vector<8x128xf32>
    %2 = tpu.matmul %0, %1, %cst {dimension_numbers = #tpu.dot_dimension_numbers<[1], [1], [0], [0], [0, 0, 1, 0], [], []>} : vector<8x256xbf16>, vector<128x256xbf16>, vector<8x128xf32> -> vector<8x128xf32>
    %3 = arith.extf %0 : vector<8x256xbf16> to vector<8x256xf32>
    %4 = arith.mulf %3, %3 : vector<8x256xf32>
    %cst_3 = arith.constant dense<0.000000e+00> : vector<8xf32>
    %5 = vector.multi_reduction <add>, %4, %cst_3 [1] : vector<8x256xf32> to vector<8xf32>
    %6 = vector.shape_cast %5 : vector<8xf32> to vector<8x1xf32>
    %7 = math.rsqrt %6 : vector<8x1xf32>
    %8 = vector.broadcast %7 : vector<8x1xf32> to vector<8x128xf32>
    %9 = arith.mulf %2, %8 : vector<8x128xf32>
    %c0_4 = arith.constant 0 : index
    %c0_5 = arith.constant 0 : index
    %10 = vector.load %arg4[%c0_4, %c0_5] : memref<8x128xf32, #tpu.memory_space<vmem>>, vector<8x128xf32>
    tpu.vector_store %arg4[%c0_4, %c0_5], %9 {strides = array<i32>} : memref<8x128xf32, #tpu.memory_space<vmem>>, vector<8x128xf32>,
    return
  }
  func.func @transform_0(%arg0: i32, %arg1: i32) -> (i32, i32) {
    %c0_i32 = arith.constant 0 : i32
    %c0_i32_0 = arith.constant 0 : i32
    return %arg0, %c0_i32 : i32, i32
  }
  func.func @transform_1(%arg0: i32, %arg1: i32) -> (i32, i32) {
    %c0_i32 = arith.constant 0 : i32
    %c0_i32_0 = arith.constant 0 : i32
    return %arg1, %c0_i32 : i32, i32
  }
  func.func @transform_2(%arg0: i32, %arg1: i32) -> (i32, i32) {
    %c0_i32 = arith.constant 0 : i32
    return %arg0, %arg1 : i32, i32
  }
}

</mosaic_0001>

<llo_original>
// kernel: tpu_custom_call.1
$region0: #{tpu_custom_call.1}
  #allocation0 [shape = 'u32[]', space=smem, size = 0x4, offset = 0x4, fixed_abs, tag = 'smem constant byte address 0x4 - core index']
  #allocation1 [shape = 'u32[144,128]{1,0:T(1,128)}', space=vmem, size = 0x12000, scoped, tag = 'internal scratch']
  %s0 = inlined_call_operand.hbm [shape: bf16[8,256], index: 0, kind: input, shape index: {}]
  %s1 = inlined_call_operand.hbm [shape: bf16[128,256], index: 1, kind: input, shape index: {}]
  %s2 = inlined_call_operand.hbm [shape: f32[8,128], index: 2, kind: output, shape index: {}]
  %s3 = sld [smem:[#allocation0]]
  $region26: #{tpu_custom_call.1} parent=0
    _
  %s5 = ssub.s32 1, %s3
  %s6 = scalar_select 0, %s5, %s3
  $region1: #{tpu_custom_call.1} parent=0
    #allocation2 [shape = 'u8[4096]{0}', space=vmem, size = 0x1000, scoped, tag = 'input window, operand 0, single buffered']
    #allocation3 [shape = 's32[1]{0}', space=sflag, size = 0x4, scoped, tag = 'scoped memory for tpu_custom_call.1']
    #allocation4 [shape = 's32[1]{0}', space=sflag, size = 0x4, scoped, tag = 'scoped memory for tpu_custom_call.1']
    #allocation5 [shape = 'u8[65536]{0}', space=vmem, size = 0x10000, scoped, tag = 'input window, operand 1, single buffered']
    #allocation6 [shape = 's32[1]{0}', space=sflag, size = 0x4, scoped, tag = 'scoped memory for tpu_custom_call.1']
    #allocation7 [shape = 'u8[4096]{0}', space=vmem, size = 0x1000, scoped, tag = 'output window, operand 0, single buffered']
    %7 = vsyncpa [#allocation3], 0
    %8 = vsyncpa [#allocation6], 0
    %9 = vsyncpa [#allocation4], 0
    // Predicated region
    $region2: #{tpu_custom_call.1} parent=1 // pred_check
      _
    $region3: #{tpu_custom_call.1} parent=1 // pred_check_branch
      %11 = sbr.rel (0) target = $region5
    $region4: #{tpu_custom_call.1} parent=1 // pred_region
      %s13 = ssub.s32 128, 128
      %14 = vsyncadd [#allocation3], %s13
      %s16 = sshll.u32 [#allocation2], 4
      %s17 = int_to_ptr.vmem [resolvable:$true] %s16
      %19 = dma.hbm_to_vmem [thread:$0]  %s0, 128, %s17, [#allocation3]
    $region5: #{tpu_custom_call.1} parent=1 // pred_fallthru
      _
    // Predicated region
    $region6: #{tpu_custom_call.1} parent=1 // pred_check
      _
    $region7: #{tpu_custom_call.1} parent=1 // pred_check_branch
      %21 = sbr.rel (0) target = $region9
    $region8: #{tpu_custom_call.1} parent=1 // pred_region
      %s23 = ssub.s32 2048, 2048
      %24 = vsyncadd [#allocation6], %s23
      %s25 = sshll.u32 [#allocation5], 4
      %s26 = int_to_ptr.vmem [resolvable:$true] %s25
      %31 = dma.hbm_to_vmem [thread:$0]  %s1, 2048, %s26, [#allocation6], 128, 128, 8
    $region9: #{tpu_custom_call.1} parent=1 // pred_fallthru
      _
    // Predicated region
    $region10: #{tpu_custom_call.1} parent=1 // pred_check
      _
    $region11: #{tpu_custom_call.1} parent=1 // pred_check_branch
      %33 = sbr.rel (0) target = $region13
    $region12: #{tpu_custom_call.1} parent=1 // pred_region
      %34 = dma.done [#allocation3], 128
    $region13: #{tpu_custom_call.1} parent=1 // pred_fallthru
      _
    // Predicated region
    $region14: #{tpu_custom_call.1} parent=1 // pred_check
      _
    $region15: #{tpu_custom_call.1} parent=1 // pred_check_branch
      %36 = sbr.rel (0) target = $region17
    $region16: #{tpu_custom_call.1} parent=1 // pred_region
      %37 = dma.done [#allocation6], 2048
    $region17: #{tpu_custom_call.1} parent=1 // pred_fallthru
      _
    %v39 = vld [vmem:[#allocation2] sm:$0xff]
    %v40 = vld [vmem:[#allocation5] sm:$0xff]
    %v41 = vld [vmem:[#allocation5 + $0x8] sm:$0xff]
    %v42 = vld [vmem:[#allocation5 + $0x10] sm:$0xff]
    %v43 = vld [vmem:[#allocation5 + $0x18] sm:$0xff]
    %v44 = vld [vmem:[#allocation5 + $0x20] sm:$0xff]
    %v45 = vld [vmem:[#allocation5 + $0x28] sm:$0xff]
    %v46 = vld [vmem:[#allocation5 + $0x30] sm:$0xff]
    %v47 = vld [vmem:[#allocation5 + $0x38] sm:$0xff]
    %v48 = vld [vmem:[#allocation5 + $0x40] sm:$0xff]
    %v49 = vld [vmem:[#allocation5 + $0x48] sm:$0xff]
    %v50 = vld [vmem:[#allocation5 + $0x50] sm:$0xff]
    %v51 = vld [vmem:[#allocation5 + $0x58] sm:$0xff]
    %v52 = vld [vmem:[#allocation5 + $0x60] sm:$0xff]
    %v53 = vld [vmem:[#allocation5 + $0x68] sm:$0xff]
    %v54 = vld [vmem:[#allocation5 + $0x70] sm:$0xff]
    %v55 = vld [vmem:[#allocation5 + $0x78] sm:$0xff]
    %v57 = vunpack.c.l.b16 %v39
    %v58 = vunpack.c.h.b16 %v39
    %v59 = vpack.c.b16 %v57, %v57
    %v60 = vpack.c.b16 %v58, %v58
    %v79 = vunpack.c.l.b16 %v40
    %v80 = vunpack.c.h.b16 %v40
    %v81 = vunpack.c.l.b16 %v41
    %v82 = vunpack.c.h.b16 %v41
    %v83 = vunpack.c.l.b16 %v42
    %v84 = vunpack.c.h.b16 %v42
    %v85 = vunpack.c.l.b16 %v43
    %v86 = vunpack.c.h.b16 %v43
    %v87 = vunpack.c.l.b16 %v44
    %v88 = vunpack.c.h.b16 %v44
    %v89 = vunpack.c.l.b16 %v45
    %v90 = vunpack.c.h.b16 %v45
    %v91 = vunpack.c.l.b16 %v46
    %v92 = vunpack.c.h.b16 %v46
    %v93 = vunpack.c.l.b16 %v47
    %v94 = vunpack.c.h.b16 %v47
    %v95 = vunpack.c.l.b16 %v48
    %v96 = vunpack.c.h.b16 %v48
    %v97 = vunpack.c.l.b16 %v49
    %v98 = vunpack.c.h.b16 %v49
    %v99 = vunpack.c.l.b16 %v50
    %v100 = vunpack.c.h.b16 %v50
    %v101 = vunpack.c.l.b16 %v51
    %v102 = vunpack.c.h.b16 %v51
    %v103 = vunpack.c.l.b16 %v52
    %v104 = vunpack.c.h.b16 %v52
    %v105 = vunpack.c.l.b16 %v53
    %v106 = vunpack.c.h.b16 %v53
    %v107 = vunpack.c.l.b16 %v54
    %v108 = vunpack.c.h.b16 %v54
    %v109 = vunpack.c.l.b16 %v55
    %v110 = vunpack.c.h.b16 %v55
    %v111 = vpack.c.b16 %v81, %v79
    %v112 = vpack.c.b16 %v82, %v80
    %v113 = vpack.c.b16 %v85, %v83
    %v114 = vpack.c.b16 %v86, %v84
    %v115 = vpack.c.b16 %v89, %v87
    %v116 = vpack.c.b16 %v90, %v88
    %v117 = vpack.c.b16 %v93, %v91
    %v118 = vpack.c.b16 %v94, %v92
    %v119 = vpack.c.b16 %v97, %v95
    %v120 = vpack.c.b16 %v98, %v96
    %v121 = vpack.c.b16 %v101, %v99
    %v122 = vpack.c.b16 %v102, %v100
    %v123 = vpack.c.b16 %v105, %v103
    %v124 = vpack.c.b16 %v106, %v104
    %v125 = vpack.c.b16 %v109, %v107
    %v126 = vpack.c.b16 %v110, %v108
    %143 = vmatprep.subr.bf16.mxu0 %v126
    %144 = vmatpush1.bf16.xpose.msra.mxu0 %v125
    %145 = vmatprep.subr.bf16.mxu0 %v124
    %146 = vmatpush1.bf16.xpose.msra.mxu0 %v123
    %147 = vmatprep.subr.bf16.mxu0 %v122
    %148 = vmatpush1.bf16.xpose.msra.mxu0 %v121
    %149 = vmatprep.subr.bf16.mxu0 %v120
    %150 = vmatpush1.bf16.xpose.msra.mxu0 %v119
    %151 = vmatprep.subr.bf16.mxu0 %v118
    %152 = vmatpush1.bf16.xpose.msra.mxu0 %v117
    %153 = vmatprep.subr.bf16.mxu0 %v116
    %154 = vmatpush1.bf16.xpose.msra.mxu0 %v115
    %155 = vmatprep.subr.bf16.mxu0 %v114
    %156 = vmatpush1.bf16.xpose.msra.mxu0 %v113
    %157 = vmatprep.subr.bf16.mxu0 %v112
    %158 = vmatpush1.bf16.xpose.msra.mxu0 %v111
    %159 = vmatprep.subr.bf16.mxu0 0
    %160 = vmatpush2.bf16.xpose.msra.mxu0 0
    %161 = vmatprep.subr.bf16.mxu0 0
    %162 = vmatpush2.bf16.xpose.msra.mxu0 0
    %163 = vmatprep.subr.bf16.mxu0 0
    %164 = vmatpush2.bf16.xpose.msra.mxu0 0
    %165 = vmatprep.subr.bf16.mxu0 0
    %166 = vmatpush2.bf16.xpose.msra.mxu0 0
    %167 = vmatprep.subr.bf16.mxu0 0
    %168 = vmatpush2.bf16.xpose.msra.mxu0 0
    %169 = vmatprep.subr.bf16.mxu0 0
    %170 = vmatpush2.bf16.xpose.msra.mxu0 0
    %171 = vmatprep.subr.bf16.mxu0 0
    %172 = vmatpush2.bf16.xpose.msra.mxu0 0
    %173 = vmatprep.subr.bf16.mxu0 0
    %174 = vmatpush2.bf16.xpose.msra.mxu0 0
    %175 = vmatprep.mubr.bf16.mxu0 %v60
    %176 = vmatmul.mubr.bf16.gmra.mxu0 %v59
    %v177 = vpop.f32.mrf.mxu0
    %v178 = vadd.f32 0.0, %v177
    %v179 = vpop.f32.mrf.mxu0
    %v180 = vpop.f32.mrf.mxu0
    %v181 = vpop.f32.mrf.mxu0
    %182 = vdwg.mxu0
    %v183 = vunpack.c.l.bf16 %v39
    %v184 = vunpack.c.h.bf16 %v39
    %v185 = vmul.f32 %v183, %v183
    %v186 = vmul.f32 %v184, %v184
    %v187 = vadd.f32 %v185, %v186
    %188 = vadd.xlane.f32.xlu0 %v187
    %v189 = vpop.xlane.xlu0 %188
    %v190 = vrsqrt.pop %v189
    %v191 = vmul.f32 %v178, %v190
    %192 = vst [vmem:[#allocation7] sm:$0xff] %v191
    // Predicated region
    $region18: #{tpu_custom_call.1} parent=1 // pred_check
      _
    $region19: #{tpu_custom_call.1} parent=1 // pred_check_branch
      %194 = sbr.rel (0) target = $region21
    $region20: #{tpu_custom_call.1} parent=1 // pred_region
      %s196 = ssub.s32 128, 128
      %197 = vsyncadd [#allocation4], %s196
      %s199 = sshll.u32 [#allocation7], 4
      %s200 = int_to_ptr.vmem [resolvable:$true] %s199
      %202 = dma.vmem_to_hbm [thread:$0]  %s200, 128, %s2, [#allocation4]
    $region21: #{tpu_custom_call.1} parent=1 // pred_fallthru
      _
    // Predicated region
    $region22: #{tpu_custom_call.1} parent=1 // pred_check
      _
    $region23: #{tpu_custom_call.1} parent=1 // pred_check_branch
      %204 = sbr.rel (0) target = $region25
    $region24: #{tpu_custom_call.1} parent=1 // pred_region
      %205 = dma.done [#allocation4], 128
    $region25: #{tpu_custom_call.1} parent=1 // pred_fallthru
      _
    %206 = vsyncpa [#allocation3], 1
    %207 = vsyncpa [#allocation6], 1
    %208 = vsyncpa [#allocation4], 1

</llo_original>
